<compile_context>
chip_gen: v6e
topology: v6e:2x2x1
jax: 0.10.0
libtpu: 0.0.40
codegen_flags: <defaults>
</compile_context>

<pallas_src>
import jax
import jax.numpy as jnp
from jax.experimental import pallas as pl
from jax.experimental.pallas import tpu as pltpu

IN_F = 7            # input features
H1 = 32             # fc1 out
H2 = 16             # fc2 out
OUT_F = IN_F + H2   # 23
BN_EPS = 1e-5

W1_COLS = IN_F + H1         # 39  = attn(7) | fc1(32)
B_COLS = IN_F + H1 + H2     # 55  = attn_b(7) | fc1_b(32) | fc2_b(16)


def triplet_kernel(a_ref, p_ref, n_ref, w1_ref, w2_ref, b_ref,
                   oa_ref, op_ref, on_ref):
    B = oa_ref.shape[0]

    # Stack the three triplet branches into one (3B, 7) activation block.
    x = jnp.concatenate([a_ref[...], p_ref[...], n_ref[...]], axis=0)

    b_all = b_ref[...]                       # (1, 55) packed biases
    w1 = w1_ref[...]                         # (7, 39) = [attn_w | fc1_w (BN1-folded)]

    # One fused matmul for the attention logits and the fc1 pre-activation.
    z = jnp.dot(x, w1, preferred_element_type=jnp.float32)      # (3B, 39)

    # ---- attention branch: Linear(7,7) on raw x + softmax(dim=-1) ----
    logits = z[:, 0:IN_F] + b_all[:, 0:IN_F]
    m = jnp.max(logits, axis=-1, keepdims=True)
    e = jnp.exp(logits - m)
    att = e / jnp.sum(e, axis=-1, keepdims=True)
    x_hu = x * att + x                                           # (3B, 7)

    # ---- trunk: (BN1-folded) fc1 -> relu -> (BN2-folded) fc2 ----
    # TODO(synk): Dropout(p=0.2) has no deterministic train-mode equivalent;
    #             eval-mode identity used.
    h = jnp.maximum(z[:, IN_F:IN_F + H1] + b_all[:, IN_F:IN_F + H1], 0.0)
    y = jnp.dot(h, w2_ref[...], preferred_element_type=jnp.float32)
    y = y + b_all[:, IN_F + H1:B_COLS]                           # (3B, 16)

    # ---- torch.cat((x_hu, fc2_out), dim=1), one dense store per output ----
    out = jnp.concatenate([x_hu, y], axis=-1)                    # (3B, 23)
    oa_ref[...] = out[0 * B:1 * B]
    op_ref[...] = out[1 * B:2 * B]
    on_ref[...] = out[2 * B:3 * B]


def init_params(key):
    """Raw params mimicking PyTorch default Linear / BatchNorm init."""
    ks = jax.random.split(key, 6)

    def linear(kw, kb, fan_in, fan_out):
        bound = 1.0 / jnp.sqrt(float(fan_in))
        # stored as (in, out) so the math is x @ W (== x @ W_torch.T)
        w = jax.random.uniform(kw, (fan_in, fan_out), jnp.float32, -bound, bound)
        b = jax.random.uniform(kb, (1, fan_out), jnp.float32, -bound, bound)
        return w, b

    attn_w, attn_b = linear(ks[0], ks[1], IN_F, IN_F)
    fc1_w, fc1_b = linear(ks[2], ks[3], IN_F, H1)
    fc2_w, fc2_b = linear(ks[4], ks[5], H1, H2)

    bn1_g = jnp.ones((1, IN_F), jnp.float32)
    bn1_b = jnp.zeros((1, IN_F), jnp.float32)
    bn1_m = jnp.zeros((1, IN_F), jnp.float32)
    bn1_v = jnp.ones((1, IN_F), jnp.float32)
    bn2_g = jnp.ones((1, H1), jnp.float32)
    bn2_b = jnp.zeros((1, H1), jnp.float32)
    bn2_m = jnp.zeros((1, H1), jnp.float32)
    bn2_v = jnp.ones((1, H1), jnp.float32)

    return (attn_w, attn_b, fc1_w, fc1_b, fc2_w, fc2_b,
            bn1_g, bn1_b, bn1_m, bn1_v, bn2_g, bn2_b, bn2_m, bn2_v)


def fold_and_pack_params(params):
    """Fold eval-mode BatchNorms into the Linear layers and pack into 3 arrays."""
    (attn_w, attn_b, fc1_w, fc1_b, fc2_w, fc2_b,
     bn1_g, bn1_b, bn1_m, bn1_v, bn2_g, bn2_b, bn2_m, bn2_v) = params

    # fc1(bn1(x)) = x @ (diag(s1) @ fc1_w) + (fc1_b + (bn1_b - bn1_m*s1) @ fc1_w)
    s1 = bn1_g / jnp.sqrt(bn1_v + BN_EPS)            # (1, 7)
    t1 = bn1_b - bn1_m * s1                          # (1, 7)
    fc1_w_f = s1.reshape(IN_F, 1) * fc1_w            # (7, 32)
    fc1_b_f = fc1_b + t1 @ fc1_w                     # (1, 32)

    # fc2(bn2(h)) = h @ (diag(s2) @ fc2_w) + (fc2_b + (bn2_b - bn2_m*s2) @ fc2_w)
    s2 = bn2_g / jnp.sqrt(bn2_v + BN_EPS)            # (1, 32)
    t2 = bn2_b - bn2_m * s2                          # (1, 32)
    fc2_w_f = s2.reshape(H1, 1) * fc2_w              # (32, 16)
    fc2_b_f = fc2_b + t2 @ fc2_w                     # (1, 16)

    w1 = jnp.concatenate([attn_w, fc1_w_f], axis=1)            # (7, 39)
    b_all = jnp.concatenate([attn_b, fc1_b_f, fc2_b_f], axis=1)  # (1, 55)
    return w1, fc2_w_f, b_all


@jax.jit
def triplet_forward(anchor, positive, negative, kparams):
    w1, w2, b_all = kparams
    B = anchor.shape[0]

    def vmem_spec():
        return pl.BlockSpec(memory_space=pltpu.MemorySpace.VMEM)

    out_shape = tuple(jax.ShapeDtypeStruct((B, OUT_F), jnp.float32)
                      for _ in range(3))

    out_a, out_p, out_n = pl.pallas_call(
        triplet_kernel,
        out_shape=out_shape,
        in_specs=[vmem_spec() for _ in range(6)],
        out_specs=(vmem_spec(), vmem_spec(), vmem_spec()),
    )(anchor, positive, negative, w1, w2, b_all)
    return out_a, out_p, out_n


def forward_once_ref(x, params):
    """Pure-JAX reference using the RAW (unfolded) parameters."""
    (attn_w, attn_b, fc1_w, fc1_b, fc2_w, fc2_b,
     bn1_g, bn1_b, bn1_m, bn1_v, bn2_g, bn2_b, bn2_m, bn2_v) = params
    xn = (x - bn1_m) / jnp.sqrt(bn1_v + BN_EPS) * bn1_g + bn1_b
    att = jax.nn.softmax(x @ attn_w + attn_b, axis=-1)
    x_hu = x * att + x
    h = jnp.maximum(xn @ fc1_w + fc1_b, 0.0)
    h = (h - bn2_m) / jnp.sqrt(bn2_v + BN_EPS) * bn2_g + bn2_b
    y = h @ fc2_w + fc2_b
    return jnp.concatenate([x_hu, y], axis=1)


if __name__ == "__main__":
    key = jax.random.PRNGKey(0)
    kp, ka, kpz, kn = jax.random.split(key, 4)

    B = 8
    params = init_params(kp)
    kparams = fold_and_pack_params(params)

    anchor = jax.random.normal(ka, (B, IN_F), jnp.float32)
    positive = jax.random.normal(kpz, (B, IN_F), jnp.float32)
    negative = jax.random.normal(kn, (B, IN_F), jnp.float32)

    out_a, out_p, out_n = triplet_forward(anchor, positive, negative, kparams)
    jax.block_until_ready((out_a, out_p, out_n))

    # sanity check against a pure-JAX reference using the raw parameters
    ref_a = forward_once_ref(anchor, params)
    ref_p = forward_once_ref(positive, params)
    ref_n = forward_once_ref(negative, params)
    assert out_a.shape == (B, OUT_F)
    for got, ref in ((out_a, ref_a), (out_p, ref_p), (out_n, ref_n)):
        assert jnp.allclose(got, ref, atol=1e-4, rtol=1e-4), "mismatch vs reference"

    print("KERNEL_OK")
</pallas_src>

<mosaic_0001>
module attributes {stable_mosaic.version = 11 : i64} {
  func.func @triplet_kernel(%arg0: memref<8x7xf32, #tpu.memory_space<vmem>>, %arg1: memref<8x7xf32, #tpu.memory_space<vmem>>, %arg2: memref<8x7xf32, #tpu.memory_space<vmem>>, %arg3: memref<7x39xf32, #tpu.memory_space<vmem>>, %arg4: memref<32x16xf32, #tpu.memory_space<vmem>>, %arg5: memref<1x55xf32, #tpu.memory_space<vmem>>, %arg6: memref<8x23xf32, #tpu.memory_space<vmem>>, %arg7: memref<8x23xf32, #tpu.memory_space<vmem>>, %arg8: memref<8x23xf32, #tpu.memory_space<vmem>>) attributes {dimension_semantics = [], scalar_prefetch = 0 : i64, scratch_operands = 0 : i64, tpu.core_type = #tpu.core_type<tc>} {
    %c0 = arith.constant 0 : index
    %c0_0 = arith.constant 0 : index
    %0 = vector.load %arg0[%c0, %c0_0] : memref<8x7xf32, #tpu.memory_space<vmem>>, vector<8x7xf32>
    %c0_1 = arith.constant 0 : index
    %c0_2 = arith.constant 0 : index
    %1 = vector.load %arg1[%c0_1, %c0_2] : memref<8x7xf32, #tpu.memory_space<vmem>>, vector<8x7xf32>
    %c0_3 = arith.constant 0 : index
    %c0_4 = arith.constant 0 : index
    %2 = vector.load %arg2[%c0_3, %c0_4] : memref<8x7xf32, #tpu.memory_space<vmem>>, vector<8x7xf32>
    %3 = tpu.concatenate %0, %1, %2 in 0 : vector<8x7xf32>, vector<8x7xf32>, vector<8x7xf32> -> vector<24x7xf32>
    %c0_5 = arith.constant 0 : index
    %c0_6 = arith.constant 0 : index
    %4 = vector.load %arg5[%c0_5, %c0_6] : memref<1x55xf32, #tpu.memory_space<vmem>>, vector<1x55xf32>
    %c0_7 = arith.constant 0 : index
    %c0_8 = arith.constant 0 : index
    %5 = vector.load %arg3[%c0_7, %c0_8] : memref<7x39xf32, #tpu.memory_space<vmem>>, vector<7x39xf32>
    %cst = arith.constant dense<0.000000e+00> : vector<24x39xf32>
    %6 = tpu.matmul %3, %5, %cst {dimension_numbers = #tpu.dot_dimension_numbers<[1], [0], [0], [1], [0, 0, 1, 1], [], []>} : vector<24x7xf32>, vector<7x39xf32>, vector<24x39xf32> -> vector<24x39xf32>
    %7 = vector.extract_strided_slice %6 {offsets = [0, 0], sizes = [24, 7], strides = [1, 1]} : vector<24x39xf32> to vector<24x7xf32>
    %8 = vector.extract_strided_slice %4 {offsets = [0, 0], sizes = [1, 7], strides = [1, 1]} : vector<1x55xf32> to vector<1x7xf32>
    %9 = vector.broadcast %8 : vector<1x7xf32> to vector<24x7xf32>
    %10 = arith.addf %7, %9 : vector<24x7xf32>
    %cst_9 = arith.constant dense<0xFF800000> : vector<24xf32>
    %11 = vector.multi_reduction <maximumf>, %10, %cst_9 [1] : vector<24x7xf32> to vector<24xf32>
    %12 = vector.shape_cast %11 : vector<24xf32> to vector<24x1xf32>
    %13 = vector.broadcast %12 : vector<24x1xf32> to vector<24x7xf32>
    %14 = arith.subf %10, %13 : vector<24x7xf32>
    %15 = math.exp %14 : vector<24x7xf32>
    %cst_10 = arith.constant dense<0.000000e+00> : vector<24xf32>
    %16 = vector.multi_reduction <add>, %15, %cst_10 [1] : vector<24x7xf32> to vector<24xf32>
    %17 = vector.shape_cast %16 : vector<24xf32> to vector<24x1xf32>
    %18 = vector.broadcast %17 : vector<24x1xf32> to vector<24x7xf32>
    %19 = arith.divf %15, %18 : vector<24x7xf32>
    %20 = arith.mulf %3, %19 : vector<24x7xf32>
    %21 = arith.addf %20, %3 : vector<24x7xf32>
    %22 = vector.extract_strided_slice %6 {offsets = [0, 7], sizes = [24, 32], strides = [1, 1]} : vector<24x39xf32> to vector<24x32xf32>
    %23 = vector.extract_strided_slice %4 {offsets = [0, 7], sizes = [1, 32], strides = [1, 1]} : vector<1x55xf32> to vector<1x32xf32>
    %24 = vector.broadcast %23 : vector<1x32xf32> to vector<24x32xf32>
    %25 = arith.addf %22, %24 : vector<24x32xf32>
    %cst_11 = arith.constant 0.000000e+00 : f32
    %26 = vector.broadcast %cst_11 : f32 to vector<24x32xf32>
    %27 = arith.maximumf %25, %26 : vector<24x32xf32>
    %c0_12 = arith.constant 0 : index
    %c0_13 = arith.constant 0 : index
    %28 = vector.load %arg4[%c0_12, %c0_13] : memref<32x16xf32, #tpu.memory_space<vmem>>, vector<32x16xf32>
    %cst_14 = arith.constant dense<0.000000e+00> : vector<24x16xf32>
    %29 = tpu.matmul %27, %28, %cst_14 {dimension_numbers = #tpu.dot_dimension_numbers<[1], [0], [0], [1], [0, 0, 1, 1], [], []>} : vector<24x32xf32>, vector<32x16xf32>, vector<24x16xf32> -> vector<24x16xf32>
    %30 = vector.extract_strided_slice %4 {offsets = [0, 39], sizes = [1, 16], strides = [1, 1]} : vector<1x55xf32> to vector<1x16xf32>
    %31 = vector.broadcast %30 : vector<1x16xf32> to vector<24x16xf32>
    %32 = arith.addf %29, %31 : vector<24x16xf32>
    %33 = tpu.concatenate %21, %32 in 1 : vector<24x7xf32>, vector<24x16xf32> -> vector<24x23xf32>
    %34 = vector.extract_strided_slice %33 {offsets = [0, 0], sizes = [8, 23], strides = [1, 1]} : vector<24x23xf32> to vector<8x23xf32>
    %c0_15 = arith.constant 0 : index
    %c0_16 = arith.constant 0 : index
    %35 = vector.load %arg6[%c0_15, %c0_16] : memref<8x23xf32, #tpu.memory_space<vmem>>, vector<8x23xf32>
    tpu.vector_store %arg6[%c0_15, %c0_16], %34 {strides = array<i32>} : memref<8x23xf32, #tpu.memory_space<vmem>>, vector<8x23xf32>,
    %36 = vector.extract_strided_slice %33 {offsets = [8, 0], sizes = [8, 23], strides = [1, 1]} : vector<24x23xf32> to vector<8x23xf32>
    %c0_17 = arith.constant 0 : index
    %c0_18 = arith.constant 0 : index
    %37 = vector.load %arg7[%c0_17, %c0_18] : memref<8x23xf32, #tpu.memory_space<vmem>>, vector<8x23xf32>
    tpu.vector_store %arg7[%c0_17, %c0_18], %36 {strides = array<i32>} : memref<8x23xf32, #tpu.memory_space<vmem>>, vector<8x23xf32>,
    %38 = vector.extract_strided_slice %33 {offsets = [16, 0], sizes = [8, 23], strides = [1, 1]} : vector<24x23xf32> to vector<8x23xf32>
    %c0_19 = arith.constant 0 : index
    %c0_20 = arith.constant 0 : index
    %39 = vector.load %arg8[%c0_19, %c0_20] : memref<8x23xf32, #tpu.memory_space<vmem>>, vector<8x23xf32>
    tpu.vector_store %arg8[%c0_19, %c0_20], %38 {strides = array<i32>} : memref<8x23xf32, #tpu.memory_space<vmem>>, vector<8x23xf32>,
    return
  }
}

</mosaic_0001>

<llo_original>
// kernel: triplet_forward.1
$region0: #{triplet_forward.1}
  #allocation0 [shape = 'u32[]', space=smem, size = 0x4, offset = 0x4, fixed_abs, tag = 'smem constant byte address 0x4 - core index']
  #allocation1 [shape = 'u32[144,128]{1,0:T(1,128)}', space=vmem, size = 0x12000, scoped, tag = 'internal scratch']
  %s0 = inlined_call_operand.vmem [shape: f32[8,7], index: 0, kind: input, shape index: {}]
  %s1 = inlined_call_operand.vmem [shape: f32[8,7], index: 1, kind: input, shape index: {}]
  %s2 = inlined_call_operand.vmem [shape: f32[8,7], index: 2, kind: input, shape index: {}]
  %s3 = inlined_call_operand.vmem [shape: f32[7,39], index: 3, kind: input, shape index: {}]
  %s4 = inlined_call_operand.vmem [shape: f32[32,16], index: 4, kind: input, shape index: {}]
  %s5 = inlined_call_operand.vmem [shape: f32[1,55], index: 5, kind: input, shape index: {}]
  %s6 = inlined_call_operand.hbm [shape: f32[8,23], index: 6, kind: output, shape index: {0}]
  %s7 = inlined_call_operand.hbm [shape: f32[8,23], index: 7, kind: output, shape index: {1}]
  %s8 = inlined_call_operand.hbm [shape: f32[8,23], index: 8, kind: output, shape index: {2}]
  %9 = xla_tuple %s6, %s7, %s8
  %s10 = sld [smem:[#allocation0]]
  $region50: #{triplet_forward.1} parent=0
    _
  %s12 = ssub.s32 1, %s10
  %s13 = scalar_select 0, %s12, %s10
  $region1: #{triplet_forward.1} parent=0
    #allocation2 [shape = 'u8[4096]{0}', space=vmem, size = 0x1000, scoped, tag = 'output window, operand 0, single buffered']
    #allocation3 [shape = 's32[1]{0}', space=sflag, size = 0x4, scoped, tag = 'scoped memory for triplet_forward.1']
    #allocation4 [shape = 'u8[4096]{0}', space=vmem, size = 0x1000, scoped, tag = 'output window, operand 1, single buffered']
    #allocation5 [shape = 's32[1]{0}', space=sflag, size = 0x4, scoped, tag = 'scoped memory for triplet_forward.1']
    #allocation6 [shape = 'u8[4096]{0}', space=vmem, size = 0x1000, scoped, tag = 'output window, operand 2, single buffered']
    %14 = vsyncpa [#allocation3], 0
    %15 = vsyncpa [#allocation5], 0
    // Predicated region
    $region2: #{triplet_forward.1} parent=1 // pred_check
      _
    $region3: #{triplet_forward.1} parent=1 // pred_check_branch
      %17 = sbr.rel (0) target = $region5
    $region4: #{triplet_forward.1} parent=1 // pred_region
      _
    $region5: #{triplet_forward.1} parent=1 // pred_fallthru
      _
    // Predicated region
    $region6: #{triplet_forward.1} parent=1 // pred_check
      _
    $region7: #{triplet_forward.1} parent=1 // pred_check_branch
      %19 = sbr.rel (0) target = $region9
    $region8: #{triplet_forward.1} parent=1 // pred_region
      _
    $region9: #{triplet_forward.1} parent=1 // pred_fallthru
      _
    // Predicated region
    $region10: #{triplet_forward.1} parent=1 // pred_check
      _
    $region11: #{triplet_forward.1} parent=1 // pred_check_branch
      %21 = sbr.rel (0) target = $region13
    $region12: #{triplet_forward.1} parent=1 // pred_region
      _
    $region13: #{triplet_forward.1} parent=1 // pred_fallthru
      _
    // Predicated region
    $region14: #{triplet_forward.1} parent=1 // pred_check
      _
    $region15: #{triplet_forward.1} parent=1 // pred_check_branch
      %23 = sbr.rel (0) target = $region17
    $region16: #{triplet_forward.1} parent=1 // pred_region
      _
    $region17: #{triplet_forward.1} parent=1 // pred_fallthru
      _
    // Predicated region
    $region18: #{triplet_forward.1} parent=1 // pred_check
      _
    $region19: #{triplet_forward.1} parent=1 // pred_check_branch
      %25 = sbr.rel (0) target = $region21
    $region20: #{triplet_forward.1} parent=1 // pred_region
      _
    $region21: #{triplet_forward.1} parent=1 // pred_fallthru
      _
    // Predicated region
    $region22: #{triplet_forward.1} parent=1 // pred_check
      _
    $region23: #{triplet_forward.1} parent=1 // pred_check_branch
      %27 = sbr.rel (0) target = $region25
    $region24: #{triplet_forward.1} parent=1 // pred_region
      _
    $region25: #{triplet_forward.1} parent=1 // pred_fallthru
      _
    %v28 = vld [vmem:[%s0] sm:$0xff]
    %v29 = vld [vmem:[%s1] sm:$0xff]
    %v30 = vld [vmem:[%s2] sm:$0xff]
    %v31 = vld [vmem:[%s5] sm:$0x1]
    %v32 = vld [vmem:[%s3] sm:$0x7f]
    %vm33 = vcmask 56320
    %v35 = vsel %vm33, %v28, 0
    %v38 = vsel %vm33, %v29, 0
    %v41 = vsel %vm33, %v30, 0
    %vm43 = vcmask 1046528
    %v45 = vsel %vm43, %v32, 0
    %47 = vmatprep.subr.mxu0 0.0
    %48 = vmatpush1.msra.mxu0 0.0
    %49 = vmatprep.subr.mxu0 0.0
    %50 = vmatpush1.msra.mxu0 0.0
    %51 = vmatprep.subr.mxu0 0.0
    %52 = vmatpush1.msra.mxu0 0.0
    %53 = vmatprep.subr.mxu0 0.0
    %54 = vmatpush1.msra.mxu0 0.0
    %55 = vmatprep.subr.mxu0 0.0
    %56 = vmatpush1.msra.mxu0 0.0
    %57 = vmatprep.subr.mxu0 0.0
    %58 = vmatpush1.msra.mxu0 0.0
    %59 = vmatprep.subr.mxu0 0.0
    %60 = vmatpush1.msra.mxu0 0.0
    %61 = vmatprep.subr.mxu0 0.0
    %62 = vmatpush1.msra.mxu0 0.0
    %63 = vmatprep.subr.mxu0 0.0
    %64 = vmatpush1.msra.mxu0 0.0
    %65 = vmatprep.subr.mxu0 0.0
    %66 = vmatpush1.msra.mxu0 0.0
    %67 = vmatprep.subr.mxu0 0.0
    %68 = vmatpush1.msra.mxu0 0.0
    %69 = vmatprep.subr.mxu0 0.0
    %70 = vmatpush1.msra.mxu0 0.0
    %71 = vmatprep.subr.mxu0 0.0
    %72 = vmatpush1.msra.mxu0 0.0
    %73 = vmatprep.subr.mxu0 0.0
    %74 = vmatpush1.msra.mxu0 0.0
    %75 = vmatprep.subr.mxu0 0.0
    %76 = vmatpush1.msra.mxu0 0.0
    %77 = vmatprep.subr.mxu0 0.0
    %78 = vmatpush1.msra.mxu0 %v45
    %79 = vmatprep.subr.mxu0 0.0
    %80 = vmatpush2.msra.mxu0 0.0
    %81 = vmatprep.subr.mxu0 0.0
    %82 = vmatpush2.msra.mxu0 0.0
    %83 = vmatprep.subr.mxu0 0.0
    %84 = vmatpush2.msra.mxu0 0.0
    %85 = vmatprep.subr.mxu0 0.0
    %86 = vmatpush2.msra.mxu0 0.0
    %87 = vmatprep.subr.mxu0 0.0
    %88 = vmatpush2.msra.mxu0 0.0
    %89 = vmatprep.subr.mxu0 0.0
    %90 = vmatpush2.msra.mxu0 0.0
    %91 = vmatprep.subr.mxu0 0.0
    %92 = vmatpush2.msra.mxu0 0.0
    %93 = vmatprep.subr.mxu0 0.0
    %94 = vmatpush2.msra.mxu0 0.0
    %95 = vmatprep.subr.mxu0 0.0
    %96 = vmatpush2.msra.mxu0 0.0
    %97 = vmatprep.subr.mxu0 0.0
    %98 = vmatpush2.msra.mxu0 0.0
    %99 = vmatprep.subr.mxu0 0.0
    %100 = vmatpush2.msra.mxu0 0.0
    %101 = vmatprep.subr.mxu0 0.0
    %102 = vmatpush2.msra.mxu0 0.0
    %103 = vmatprep.subr.mxu0 0.0
    %104 = vmatpush2.msra.mxu0 0.0
    %105 = vmatprep.subr.mxu0 0.0
    %106 = vmatpush2.msra.mxu0 0.0
    %107 = vmatprep.subr.mxu0 0.0
    %108 = vmatpush2.msra.mxu0 0.0
    %109 = vmatprep.subr.mxu0 0.0
    %110 = vmatpush2.msra.mxu0 0.0
    %111 = vmatprep.mubr.f32.mxu0 0.0
    %112 = vmatmul.mubr.f32.gmra.mxu0 %v35
    %v113 = vpop.f32.mrf.mxu0
    %v114 = vadd.f32 0.0, %v113
    %v115 = vpop.f32.mrf.mxu0
    %116 = vmatprep.mubr.f32.mxu0 0.0
    %117 = vmatmul.mubr.f32.gmra.mxu0 %v38
    %v118 = vpop.f32.mrf.mxu0
    %v119 = vadd.f32 0.0, %v118
    %v120 = vpop.f32.mrf.mxu0
    %121 = vmatprep.mubr.f32.mxu0 0.0
    %122 = vmatmul.mubr.f32.gmra.mxu0 %v41
    %v123 = vpop.f32.mrf.mxu0
    %v124 = vadd.f32 0.0, %v123
    %v125 = vpop.f32.mrf.mxu0
    %126 = vdwg.mxu0
    %v128 = vlaneseq
    %v129 = vshrl.u32 %v128, 7
    %v130 = vsub.s32 0, %v129
    %v131 = vrot.slane %v31, %v130
    %v133 = vadd.f32 %v114, %v131
    %v134 = vadd.f32 %v119, %v131
    %v135 = vadd.f32 %v124, %v131
    %v136 = vsel %vm33, %v133, -inf
    %137 = vmax.xlane.f32.xlu0 %v136
    %v138 = vpop.xlane.xlu0 %137
    %v139 = vsel %vm33, %v134, -inf
    %140 = vmax.xlane.f32.xlu0 %v139
    %v141 = vpop.xlane.xlu0 %140
    %v142 = vsel %vm33, %v135, -inf
    %143 = vmax.xlane.f32.xlu0 %v142
    %v144 = vpop.xlane.xlu0 %143
    %v145 = vsub.f32 %v133, %v138
    %v146 = vsub.f32 %v134, %v141
    %v147 = vsub.f32 %v135, %v144
    %v148 = vmul.f32 %v145, 1.442695
    %v149 = vpow.pop %v148
    %v150 = vmul.f32 %v146, 1.442695
    %v151 = vpow.pop %v150
    %v152 = vmul.f32 %v147, 1.442695
    %v153 = vpow.pop %v152
    %v154 = vsel %vm33, %v149, 0.0
    %155 = vadd.xlane.f32.xlu0 %v154
    %v156 = vpop.xlane.xlu0 %155
    %v157 = vsel %vm33, %v151, 0.0
    %158 = vadd.xlane.f32.xlu0 %v157
    %v159 = vpop.xlane.xlu0 %158
    %v160 = vsel %vm33, %v153, 0.0
    %161 = vadd.xlane.f32.xlu0 %v160
    %v162 = vpop.xlane.xlu0 %161
    %v163 = vrcp.pop %v156
    %v164 = vmul.f32 %v149, %v163
    %v165 = vrcp.pop %v159
    %v166 = vmul.f32 %v151, %v165
    %v167 = vrcp.pop %v162
    %v168 = vmul.f32 %v153, %v167
    %v169 = vmul.f32 %v28, %v164
    %v170 = vmul.f32 %v29, %v166
    %v171 = vmul.f32 %v30, %v168
    %v172 = vadd.f32 %v169, %v28
    %v173 = vadd.f32 %v170, %v29
    %v174 = vadd.f32 %v171, %v30
    %v175 = vmax.f32 %v133, 0.0
    %v176 = vmax.f32 %v134, 0.0
    %v177 = vmax.f32 %v135, 0.0
    %v178 = vld [vmem:[%s4] sm:$0xff]
    %v179 = vld [vmem:[%s4 + $0x8] sm:$0xff]
    %v180 = vld [vmem:[%s4 + $0x10] sm:$0xff]
    %v181 = vld [vmem:[%s4 + $0x18] sm:$0xff]
    %185 = vrot.lane.b32.xlu0 %v175, 121
    %v186 = vpop.permute.xlu0 %185
    %187 = vrot.lane.b32.xlu0 %v176, 121
    %v188 = vpop.permute.xlu0 %187
    %189 = vrot.lane.b32.xlu0 %v177, 121
    %v190 = vpop.permute.xlu0 %189
    %191 = vrot.lane.b32.xlu0 %v131, 89
    %v192 = vpop.permute.xlu0 %191
    %vm194 = vcmask 261120
    %v195 = vsel %vm194, %v186, 0
    %v197 = vsel %vm194, %v188, 0
    %v199 = vsel %vm194, %v190, 0
    %201 = vmatprep.subr.mxu0 0.0
    %202 = vmatpush1.msra.mxu0 0.0
    %203 = vmatprep.subr.mxu0 0.0
    %204 = vmatpush1.msra.mxu0 0.0
    %205 = vmatprep.subr.mxu0 0.0
    %206 = vmatpush1.msra.mxu0 0.0
    %207 = vmatprep.subr.mxu0 0.0
    %208 = vmatpush1.msra.mxu0 0.0
    %209 = vmatprep.subr.mxu0 0.0
    %210 = vmatpush1.msra.mxu0 0.0
    %211 = vmatprep.subr.mxu0 0.0
    %212 = vmatpush1.msra.mxu0 0.0
    %213 = vmatprep.subr.mxu0 0.0
    %214 = vmatpush1.msra.mxu0 0.0
    %215 = vmatprep.subr.mxu0 0.0
    %216 = vmatpush1.msra.mxu0 0.0
    %217 = vmatprep.subr.mxu0 0.0
    %218 = vmatpush1.msra.mxu0 0.0
    %219 = vmatprep.subr.mxu0 0.0
    %220 = vmatpush1.msra.mxu0 0.0
    %221 = vmatprep.subr.mxu0 0.0
    %222 = vmatpush1.msra.mxu0 0.0
    %223 = vmatprep.subr.mxu0 0.0
    %224 = vmatpush1.msra.mxu0 0.0
    %225 = vmatprep.subr.mxu0 0.0
    %226 = vmatpush1.msra.mxu0 %v181
    %227 = vmatprep.subr.mxu0 0.0
    %228 = vmatpush1.msra.mxu0 %v180
    %229 = vmatprep.subr.mxu0 0.0
    %230 = vmatpush1.msra.mxu0 %v179
    %231 = vmatprep.subr.mxu0 0.0
    %232 = vmatpush1.msra.mxu0 %v178
    %233 = vmatprep.subr.mxu0 0.0
    %234 = vmatpush2.msra.mxu0 0.0
    %235 = vmatprep.subr.mxu0 0.0
    %236 = vmatpush2.msra.mxu0 0.0
    %237 = vmatprep.subr.mxu0 0.0
    %238 = vmatpush2.msra.mxu0 0.0
    %239 = vmatprep.subr.mxu0 0.0
    %240 = vmatpush2.msra.mxu0 0.0
    %241 = vmatprep.subr.mxu0 0.0
    %242 = vmatpush2.msra.mxu0 0.0
    %243 = vmatprep.subr.mxu0 0.0
    %244 = vmatpush2.msra.mxu0 0.0
    %245 = vmatprep.subr.mxu0 0.0
    %246 = vmatpush2.msra.mxu0 0.0
    %247 = vmatprep.subr.mxu0 0.0
    %248 = vmatpush2.msra.mxu0 0.0
    %249 = vmatprep.subr.mxu0 0.0
    %250 = vmatpush2.msra.mxu0 0.0
    %251 = vmatprep.subr.mxu0 0.0
    %252 = vmatpush2.msra.mxu0 0.0
    %253 = vmatprep.subr.mxu0 0.0
    %254 = vmatpush2.msra.mxu0 0.0
    %255 = vmatprep.subr.mxu0 0.0
    %256 = vmatpush2.msra.mxu0 0.0
    %257 = vmatprep.subr.mxu0 0.0
    %258 = vmatpush2.msra.mxu0 0.0
    %259 = vmatprep.subr.mxu0 0.0
    %260 = vmatpush2.msra.mxu0 0.0
    %261 = vmatprep.subr.mxu0 0.0
    %262 = vmatpush2.msra.mxu0 0.0
    %263 = vmatprep.subr.mxu0 0.0
    %264 = vmatpush2.msra.mxu0 0.0
    %265 = vmatprep.mubr.f32.mxu0 0.0
    %266 = vmatmul.mubr.f32.gmra.mxu0 %v195
    %v267 = vpop.f32.mrf.mxu0
    %v268 = vadd.f32 %v192, %v267
    %v269 = vpop.f32.mrf.mxu0
    %270 = vmatprep.mubr.f32.mxu0 0.0
    %271 = vmatmul.mubr.f32.gmra.mxu0 %v197
    %v272 = vpop.f32.mrf.mxu0
    %v273 = vadd.f32 %v192, %v272
    %v274 = vpop.f32.mrf.mxu0
    %275 = vmatprep.mubr.f32.mxu0 0.0
    %276 = vmatmul.mubr.f32.gmra.mxu0 %v199
    %v277 = vpop.f32.mrf.mxu0
    %v278 = vadd.f32 %v192, %v277
    %v279 = vpop.f32.mrf.mxu0
    %280 = vdwg.mxu0
    %284 = vrot.lane.b32.xlu0 %v268, 7
    %v285 = vpop.permute.xlu0 %284
    %286 = vrot.lane.b32.xlu0 %v273, 7
    %v287 = vpop.permute.xlu0 %286
    %288 = vrot.lane.b32.xlu0 %v278, 7
    %v289 = vpop.permute.xlu0 %288
    %v293 = vsel %vm33, %v172, %v285
    %v294 = vsel %vm33, %v173, %v287
    %v295 = vsel %vm33, %v174, %v289
    %vm296 = vcmask 187392
    %297 = vst.msk [vmem:[#allocation2] sm:$0xff] %vm296, %v293
    %298 = vst.msk [vmem:[#allocation4] sm:$0xff] %vm296, %v294
    %299 = vst.msk [vmem:[#allocation6] sm:$0xff] %vm296, %v295
    // Predicated region
    $region26: #{triplet_forward.1} parent=1 // pred_check
      _
    $region27: #{triplet_forward.1} parent=1 // pred_check_branch
      %301 = sbr.rel (0) target = $region29
    $region28: #{triplet_forward.1} parent=1 // pred_region
      %s303 = ssub.s32 128, 128
      %304 = vsyncadd [#allocation3], %s303
      %s306 = sshll.u32 [#allocation2], 4
      %s307 = int_to_ptr.vmem [resolvable:$true] %s306
      %309 = dma.vmem_to_hbm [thread:$0]  %s307, 128, %s6, [#allocation3]
    $region29: #{triplet_forward.1} parent=1 // pred_fallthru
      _
    // Predicated region
    $region30: #{triplet_forward.1} parent=1 // pred_check
      _
    $region31: #{triplet_forward.1} parent=1 // pred_check_branch
      %311 = sbr.rel (0) target = $region33
    $region32: #{triplet_forward.1} parent=1 // pred_region
      %s313 = ssub.s32 128, 128
      %314 = vsyncadd [#allocation5], %s313
      %s316 = sshll.u32 [#allocation4], 4
      %s317 = int_to_ptr.vmem [resolvable:$true] %s316
      %319 = dma.vmem_to_hbm [thread:$0]  %s317, 128, %s7, [#allocation5]
    $region33: #{triplet_forward.1} parent=1 // pred_fallthru
      _
    // Predicated region
    $region34: #{triplet_forward.1} parent=1 // pred_check
      _
    $region35: #{triplet_forward.1} parent=1 // pred_check_branch
      %321 = sbr.rel (0) target = $region37
    $region36: #{triplet_forward.1} parent=1 // pred_region
      %s323 = ssub.s32 128, 128
      %324 = vsyncadd [#allocation5], %s323
      %s326 = sshll.u32 [#allocation6], 4
      %s327 = int_to_ptr.vmem [resolvable:$true] %s326
      %329 = dma.vmem_to_hbm [thread:$0]  %s327, 128, %s8, [#allocation5]
    $region37: #{triplet_forward.1} parent=1 // pred_fallthru
      _
    // Predicated region
    $region38: #{triplet_forward.1} parent=1 // pred_check
      _
    $region39: #{triplet_forward.1} parent=1 // pred_check_branch
      %331 = sbr.rel (0) target = $region41
    $region40: #{triplet_forward.1} parent=1 // pred_region
      %332 = dma.done [#allocation3], 128
    $region41: #{triplet_forward.1} parent=1 // pred_fallthru
      _
    // Predicated region
    $region42: #{triplet_forward.1} parent=1 // pred_check
      _
    $region43: #{triplet_forward.1} parent=1 // pred_check_branch
      %334 = sbr.rel (0) target = $region45
    $region44: #{triplet_forward.1} parent=1 // pred_region
      %335 = dma.done [#allocation5], 128
    $region45: #{triplet_forward.1} parent=1 // pred_fallthru
      _
    // Predicated region
    $region46: #{triplet_forward.1} parent=1 // pred_check
      _
    $region47: #{triplet_forward.1} parent=1 // pred_check_branch
      %337 = sbr.rel (0) target = $region49
    $region48: #{triplet_forward.1} parent=1 // pred_region
      %338 = dma.done [#allocation5], 128
    $region49: #{triplet_forward.1} parent=1 // pred_fallthru
      _
    %339 = vsyncpa [#allocation3], 1
    %340 = vsyncpa [#allocation5], 1

</llo_original>
